<compile_context>
chip_gen: v6e
topology: v6e:2x2x1
jax: 0.10.0
libtpu: 0.0.40
codegen_flags: <defaults>
</compile_context>

<pallas_src>
import functools

import jax
import jax.numpy as jnp
from jax import lax
from jax.experimental import pallas as pl
from jax.experimental.pallas import tpu as pltpu

_MARGIN = 1.0
_EPS = 1e-6                        # matches F.pairwise_distance default eps
_VMEM_LIMIT_BYTES = 48 * 1024 * 1024


def _slab(tile_rows):
    """Lane-dense 2-D shape used for all per-row math inside one tile."""
    if tile_rows % 128 == 0:
        return tile_rows // 128, 128
    return 1, tile_rows            # single small tile (tile_rows == B)


def _choose_tile_rows(batch, feat, itemsize, target_bytes=4 << 20):
    """~4 MiB of input per operand per grid step (amortizes the ~0.35us/step
    pipeline overhead), rounded to a multiple of 128 so the lane-dense label
    blocks and epilogue slab stay aligned."""
    rows = target_bytes // max(feat * itemsize, 1)
    rows = max(128, (rows // 128) * 128)
    if rows >= batch:
        return batch               # single tile: block dims == full array dims
    return rows


def _contrastive_kernel(o1_ref, o2_ref, label_ref, part_ref, *,
                        margin, eps, total_rows, tile_rows, tiles_per_core):
    c = pl.program_id(0)           # core ("parallel") axis
    i = pl.program_id(1)           # streaming ("arbitrary") axis
    g, cols = _slab(tile_rows)
    feat = o1_ref.shape[-1]

    # Zero this core's resident (1, 1, 1) partial-sum block on its first step.
    @pl.when(i == 0)
    def _init():
        part_ref[...] = jnp.zeros_like(part_ref)

    # Cast AFTER the VMEM load so narrow (e.g. bf16) inputs stream over HBM at
    # native width; compute in f32 on all generations.
    o1 = o1_ref[...].astype(jnp.float32)
    o2 = o2_ref[...].astype(jnp.float32)

    # F.pairwise_distance(p=2, eps=1e-6): ||(o1 - o2) + eps||_2 per row.
    # (tile_rows, D) -> (g, 128, D) only splits the sublane dim (layout
    # preserving); the last-axis reduce lands d^2 directly lane-dense (g, 128).
    diff = (o1 - o2 + eps).reshape(g, cols, feat)
    d2 = jnp.sum(diff * diff, axis=-1)                      # (g, cols)
    d = jnp.sqrt(d2)
    sim = pl.reciprocal(1.0 + d, approx=True)               # single EUP vrcp

    label = label_ref[0].astype(jnp.float32)                # (g, cols) lane-dense
    per_row = (1.0 - label) * sim + label * jnp.maximum(margin - sim, 0.0)

    tile_idx = c * tiles_per_core + i
    row0 = tile_idx * tile_rows
    needs_mask = row0 + tile_rows > total_rows              # last / phantom tiles only

    @pl.when(jnp.logical_not(needs_mask))
    def _accumulate():
        part_ref[...] += jnp.sum(per_row, keepdims=True)[None]      # (1,1,1)

    @pl.when(needs_mask)
    def _accumulate_masked():
        # Rows past B are OOB-padded garbage (possibly NaN); select them out.
        rows = row0 + (lax.broadcasted_iota(jnp.int32, (g, cols), 0) * cols
                       + lax.broadcasted_iota(jnp.int32, (g, cols), 1))
        masked = jnp.where(rows < total_rows, per_row, 0.0)
        part_ref[...] += jnp.sum(masked, keepdims=True)[None]        # (1,1,1)


def contrastive_loss(output1, output2, label, batch_size=None, *,
                     margin=_MARGIN, tile_rows=None, num_cores=2):
    """output1, output2: (B, D); label: (B,) any numeric dtype. Returns f32 loss."""
    del batch_size                 # kept for signature parity with the torch module
    B, D = output1.shape
    itemsize = jnp.dtype(output1.dtype).itemsize

    if tile_rows is None:
        tile_rows = _choose_tile_rows(B, D, itemsize)
    else:
        tile_rows = int(tile_rows)
        if tile_rows < B:
            tile_rows = max(128, (tile_rows // 128) * 128)
    if tile_rows >= B:
        tile_rows = B

    total_tiles = pl.cdiv(B, tile_rows)
    # Leading "parallel" axis: one resident partial-sum block per TensorCore
    # (~2x on v7x's 2-TC chips; just an extra loop level on v5e/v6e).
    num_cores = num_cores if total_tiles >= 2 else 1
    tiles_per_core = pl.cdiv(total_tiles, num_cores)
    num_slots = num_cores * tiles_per_core
    last_tile = total_tiles - 1
    g, cols = _slab(tile_rows)

    # Lane-dense label stream in NATIVE dtype: pad to the grid extent (covers
    # ragged tail + phantom slots) and pre-block as (num_slots, g, 128).
    label_flat = label.reshape(B)
    pad = num_slots * tile_rows - B
    if pad:
        label_flat = jnp.pad(label_flat, (0, pad))
    label_blocks = label_flat.reshape(num_slots, g, cols)

    def row_block(c, i):
        # Clamp phantom slots onto the last real tile; their rows are >= B and
        # get fully masked in-kernel, so the duplicate read contributes 0.
        return (jnp.minimum(c * tiles_per_core + i, last_tile), 0)

    def label_block(c, i):
        return (c * tiles_per_core + i, 0, 0)

    kernel = functools.partial(
        _contrastive_kernel,
        margin=float(margin), eps=_EPS, total_rows=B,
        tile_rows=tile_rows, tiles_per_core=tiles_per_core)

    bytes_in = int(output1.size * output1.dtype.itemsize
                   + output2.size * output2.dtype.itemsize
                   + label_blocks.size * label_blocks.dtype.itemsize)
    cost = pl.CostEstimate(
        flops=int(3 * B * D + 8 * B),   # diff/square/row-sum + per-row epilogue
        transcendentals=int(2 * B),     # sqrt + reciprocal per row
        bytes_accessed=bytes_in + 4 * num_cores)

    partials = pl.pallas_call(
        kernel,
        out_shape=jax.ShapeDtypeStruct((num_cores, 1, 1), jnp.float32),
        grid=(num_cores, tiles_per_core),
        in_specs=[
            pl.BlockSpec((tile_rows, D), row_block),
            pl.BlockSpec((tile_rows, D), row_block),
            pl.BlockSpec((1, g, cols), label_block),
        ],
        # Block index constant across the streaming axis -> resident per-core
        # partial-sum accumulator block.
        out_specs=pl.BlockSpec((1, 1, 1), lambda c, i: (c, 0, 0)),
        compiler_params=pltpu.CompilerParams(
            dimension_semantics=("parallel", "arbitrary"),
            vmem_limit_bytes=_VMEM_LIMIT_BYTES),
        cost_estimate=cost,
    )(output1, output2, label_blocks)

    # Finalize the mean outside the kernel (per-core partials must not share a
    # single accumulator block across the parallel axis).
    return jnp.sum(partials) / jnp.float32(B)


def _reference(output1, output2, label, margin=_MARGIN):
    lab = label.astype(jnp.float32)
    diff = output1.astype(jnp.float32) - output2.astype(jnp.float32) + _EPS
    d = jnp.sqrt(jnp.sum(diff * diff, axis=-1))
    sim = 1.0 / (1.0 + d)
    pos = (1.0 - lab) * sim
    neg = lab * jnp.maximum(margin - sim, 0.0)
    return jnp.mean(pos + neg)


if __name__ == "__main__":
    key = jax.random.PRNGKey(0)
    k1, k2, k3, k4, k5, k6 = jax.random.split(key, 6)

    # Case 1: small "siamese embedding" shapes, single tile.
    B, D = 8, 32
    o1 = jax.random.normal(k1, (B, D), dtype=jnp.float32)
    o2 = jax.random.normal(k2, (B, D), dtype=jnp.float32)
    lbl = jax.random.bernoulli(k3, 0.5, (B,)).astype(jnp.float32)

    loss = jax.block_until_ready(contrastive_loss(o1, o2, lbl, batch_size=B))
    ref = _reference(o1, o2, lbl)
    # approx reciprocal (~2^-12 rel err) -> compare at 1e-3.
    assert jnp.allclose(loss, ref, atol=1e-3, rtol=1e-3), (loss, ref)

    # Case 2: multi-tile path with the 2-way core split, a ragged tail tile
    # (320 = 2*128 + 64) and a phantom (fully masked) grid slot.
    B2, D2 = 320, 32
    o1b = jax.random.normal(k4, (B2, D2), dtype=jnp.float32)
    o2b = jax.random.normal(k5, (B2, D2), dtype=jnp.float32)
    lblb = jax.random.bernoulli(k6, 0.5, (B2,)).astype(jnp.float32)

    loss2 = jax.block_until_ready(
        contrastive_loss(o1b, o2b, lblb, batch_size=B2, tile_rows=128))
    ref2 = _reference(o1b, o2b, lblb)
    assert jnp.allclose(loss2, ref2, atol=1e-3, rtol=1e-3), (loss2, ref2)

    print("KERNEL_OK")
</pallas_src>

<mosaic_0001>
module attributes {stable_mosaic.version = 11 : i64} {
  func.func @_contrastive_kernel(%arg0: i32, %arg1: i32, %arg2: memref<8x32xf32, #tpu.memory_space<vmem>>, %arg3: memref<8x32xf32, #tpu.memory_space<vmem>>, %arg4: memref<1x1x8xf32, #tpu.memory_space<vmem>>, %arg5: memref<1x1x1xf32, #tpu.memory_space<vmem>>) attributes {dimension_semantics = [#tpu.dimension_semantics<parallel>, #tpu.dimension_semantics<arbitrary>], iteration_bounds = array<i64: 1, 1>, scalar_prefetch = 0 : i64, scratch_operands = 0 : i64, tpu.core_type = #tpu.core_type<tc>, window_params = [{transform_indices = @transform_0, window_bounds = array<i64: 8, 32>}, {transform_indices = @transform_1, window_bounds = array<i64: 8, 32>}, {transform_indices = @transform_2, window_bounds = array<i64: 1, 1, 8>}, {transform_indices = @transform_3, window_bounds = array<i64: 1, 1, 1>}]} {
    %c0_i32 = arith.constant 0 : i32
    %0 = arith.cmpi eq, %arg1, %c0_i32 : i32
    %1 = arith.extui %0 : i1 to i32
    %c0_i32_0 = arith.constant 0 : i32
    %2 = arith.cmpi ne, %1, %c0_i32_0 : i32
    scf.if %2 {
      %cst_16 = arith.constant 0.000000e+00 : f32
      %36 = vector.broadcast %cst_16 : f32 to vector<1x1x1xf32>
      %c0_17 = arith.constant 0 : index
      %c0_18 = arith.constant 0 : index
      %c0_19 = arith.constant 0 : index
      %37 = vector.load %arg5[%c0_17, %c0_18, %c0_19] : memref<1x1x1xf32, #tpu.memory_space<vmem>>, vector<1x1x1xf32>
      tpu.vector_store %arg5[%c0_17, %c0_18, %c0_19], %36 {strides = array<i32>} : memref<1x1x1xf32, #tpu.memory_space<vmem>>, vector<1x1x1xf32>,
    } else {
    }
    %c0 = arith.constant 0 : index
    %c0_1 = arith.constant 0 : index
    %3 = vector.load %arg2[%c0, %c0_1] : memref<8x32xf32, #tpu.memory_space<vmem>>, vector<8x32xf32>
    %c0_2 = arith.constant 0 : index
    %c0_3 = arith.constant 0 : index
    %4 = vector.load %arg3[%c0_2, %c0_3] : memref<8x32xf32, #tpu.memory_space<vmem>>, vector<8x32xf32>
    %5 = arith.subf %3, %4 : vector<8x32xf32>
    %cst = arith.constant 9.99999997E-7 : f32
    %6 = vector.broadcast %cst : f32 to vector<8x32xf32>
    %7 = arith.addf %5, %6 : vector<8x32xf32>
    %8 = vector.shape_cast %7 : vector<8x32xf32> to vector<1x8x32xf32>
    %9 = arith.mulf %8, %8 : vector<1x8x32xf32>
    %cst_4 = arith.constant dense<0.000000e+00> : vector<1x8xf32>
    %10 = vector.multi_reduction <add>, %9, %cst_4 [2] : vector<1x8x32xf32> to vector<1x8xf32>
    %11 = math.sqrt %10 : vector<1x8xf32>
    %cst_5 = arith.constant 1.000000e+00 : f32
    %12 = vector.broadcast %cst_5 : f32 to vector<1x8xf32>
    %13 = arith.addf %12, %11 : vector<1x8xf32>
    %14 = tpu.reciprocal %13 {approx = true} : vector<1x8xf32> -> vector<1x8xf32>
    %c0_6 = arith.constant 0 : index
    %c0_7 = arith.constant 0 : index
    %c0_8 = arith.constant 0 : index
    %15 = vector.load %arg4[%c0_6, %c0_7, %c0_8] : memref<1x1x8xf32, #tpu.memory_space<vmem>>, vector<1x1x8xf32>
    %16 = vector.shape_cast %15 : vector<1x1x8xf32> to vector<1x8xf32>
    %cst_9 = arith.constant 1.000000e+00 : f32
    %17 = vector.broadcast %cst_9 : f32 to vector<1x8xf32>
    %18 = arith.subf %17, %16 : vector<1x8xf32>
    %19 = arith.mulf %18, %14 : vector<1x8xf32>
    %cst_10 = arith.constant 1.000000e+00 : f32
    %20 = vector.broadcast %cst_10 : f32 to vector<1x8xf32>
    %21 = arith.subf %20, %14 : vector<1x8xf32>
    %cst_11 = arith.constant 0.000000e+00 : f32
    %22 = vector.broadcast %cst_11 : f32 to vector<1x8xf32>
    %23 = arith.maximumf %21, %22 : vector<1x8xf32>
    %24 = arith.mulf %16, %23 : vector<1x8xf32>
    %25 = arith.addf %19, %24 : vector<1x8xf32>
    %c1_i32 = arith.constant 1 : i32
    %26 = arith.muli %arg0, %c1_i32 : i32
    %27 = arith.addi %26, %arg1 : i32
    %c8_i32 = arith.constant 8 : i32
    %28 = arith.muli %27, %c8_i32 : i32
    %c8_i32_12 = arith.constant 8 : i32
    %29 = arith.addi %28, %c8_i32_12 : i32
    %c8_i32_13 = arith.constant 8 : i32
    %30 = arith.cmpi sgt, %29, %c8_i32_13 : i32
    %true = arith.constant true
    %31 = arith.xori %30, %true : i1
    %32 = arith.extui %31 : i1 to i32
    %c0_i32_14 = arith.constant 0 : i32
    %33 = arith.cmpi ne, %32, %c0_i32_14 : i32
    scf.if %33 {
      %c0_16 = arith.constant 0 : index
      %c0_17 = arith.constant 0 : index
      %c0_18 = arith.constant 0 : index
      %36 = vector.load %arg5[%c0_16, %c0_17, %c0_18] : memref<1x1x1xf32, #tpu.memory_space<vmem>>, vector<1x1x1xf32>
      %37 = vector.shape_cast %25 : vector<1x8xf32> to vector<1x1x8xf32>
      %cst_19 = arith.constant dense<0.000000e+00> : vector<1xf32>
      %38 = vector.multi_reduction <add>, %37, %cst_19 [1, 2] : vector<1x1x8xf32> to vector<1xf32>
      %39 = vector.shape_cast %38 : vector<1xf32> to vector<1x1x1xf32>
      %40 = vector.extract %39[0, 0, 0] : f32 from vector<1x1x1xf32>
      %41 = vector.broadcast %40 : f32 to vector<1x1xf32>
      %42 = vector.shape_cast %41 : vector<1x1xf32> to vector<1x1x1xf32>
      %43 = arith.addf %36, %42 : vector<1x1x1xf32>
      %c0_20 = arith.constant 0 : index
      %c0_21 = arith.constant 0 : index
      %c0_22 = arith.constant 0 : index
      %44 = vector.load %arg5[%c0_20, %c0_21, %c0_22] : memref<1x1x1xf32, #tpu.memory_space<vmem>>, vector<1x1x1xf32>
      tpu.vector_store %arg5[%c0_20, %c0_21, %c0_22], %43 {strides = array<i32>} : memref<1x1x1xf32, #tpu.memory_space<vmem>>, vector<1x1x1xf32>,
    } else {
    }
    %34 = arith.extui %30 : i1 to i32
    %c0_i32_15 = arith.constant 0 : i32
    %35 = arith.cmpi ne, %34, %c0_i32_15 : i32
    scf.if %35 {
      %36 = tpu.iota {dimensions = array<i32: 0>} : vector<1x8xi32>
      %c8_i32_16 = arith.constant 8 : i32
      %37 = vector.broadcast %c8_i32_16 : i32 to vector<1x8xi32>
      %38 = arith.muli %36, %37 : vector<1x8xi32>
      %39 = tpu.iota {dimensions = array<i32: 1>} : vector<1x8xi32>
      %40 = arith.addi %38, %39 : vector<1x8xi32>
      %41 = vector.broadcast %28 : i32 to vector<1x8xi32>
      %42 = arith.addi %41, %40 : vector<1x8xi32>
      %c8_i32_17 = arith.constant 8 : i32
      %43 = vector.broadcast %c8_i32_17 : i32 to vector<1x8xi32>
      %44 = arith.cmpi slt, %42, %43 : vector<1x8xi32>
      %cst_18 = arith.constant 0.000000e+00 : f32
      %45 = vector.broadcast %cst_18 : f32 to vector<1x8xf32>
      %46 = arith.select %44, %25, %45 : vector<1x8xi1>, vector<1x8xf32>
      %c0_19 = arith.constant 0 : index
      %c0_20 = arith.constant 0 : index
      %c0_21 = arith.constant 0 : index
      %47 = vector.load %arg5[%c0_19, %c0_20, %c0_21] : memref<1x1x1xf32, #tpu.memory_space<vmem>>, vector<1x1x1xf32>
      %48 = vector.shape_cast %46 : vector<1x8xf32> to vector<1x1x8xf32>
      %cst_22 = arith.constant dense<0.000000e+00> : vector<1xf32>
      %49 = vector.multi_reduction <add>, %48, %cst_22 [1, 2] : vector<1x1x8xf32> to vector<1xf32>
      %50 = vector.shape_cast %49 : vector<1xf32> to vector<1x1x1xf32>
      %51 = vector.extract %50[0, 0, 0] : f32 from vector<1x1x1xf32>
      %52 = vector.broadcast %51 : f32 to vector<1x1xf32>
      %53 = vector.shape_cast %52 : vector<1x1xf32> to vector<1x1x1xf32>
      %54 = arith.addf %47, %53 : vector<1x1x1xf32>
      %c0_23 = arith.constant 0 : index
      %c0_24 = arith.constant 0 : index
      %c0_25 = arith.constant 0 : index
      %55 = vector.load %arg5[%c0_23, %c0_24, %c0_25] : memref<1x1x1xf32, #tpu.memory_space<vmem>>, vector<1x1x1xf32>
      tpu.vector_store %arg5[%c0_23, %c0_24, %c0_25], %54 {strides = array<i32>} : memref<1x1x1xf32, #tpu.memory_space<vmem>>, vector<1x1x1xf32>,
    } else {
    }
    return
  }
  func.func @transform_0(%arg0: i32, %arg1: i32) -> (i32, i32) {
    %c1_i32 = arith.constant 1 : i32
    %0 = arith.muli %arg0, %c1_i32 : i32
    %1 = arith.addi %0, %arg1 : i32
    %c0_i32 = arith.constant 0 : i32
    %2 = arith.minsi %1, %c0_i32 : i32
    %c0_i32_0 = arith.constant 0 : i32
    %c0_i32_1 = arith.constant 0 : i32
    return %2, %c0_i32_0 : i32, i32
  }
  func.func @transform_1(%arg0: i32, %arg1: i32) -> (i32, i32) {
    %c1_i32 = arith.constant 1 : i32
    %0 = arith.muli %arg0, %c1_i32 : i32
    %1 = arith.addi %0, %arg1 : i32
    %c0_i32 = arith.constant 0 : i32
    %2 = arith.minsi %1, %c0_i32 : i32
    %c0_i32_0 = arith.constant 0 : i32
    %c0_i32_1 = arith.constant 0 : i32
    return %2, %c0_i32_0 : i32, i32
  }
  func.func @transform_2(%arg0: i32, %arg1: i32) -> (i32, i32, i32) {
    %c1_i32 = arith.constant 1 : i32
    %0 = arith.muli %arg0, %c1_i32 : i32
    %1 = arith.addi %0, %arg1 : i32
    %c0_i32 = arith.constant 0 : i32
    %c0_i32_0 = arith.constant 0 : i32
    %c0_i32_1 = arith.constant 0 : i32
    return %1, %c0_i32, %c0_i32_0 : i32, i32, i32
  }
  func.func @transform_3(%arg0: i32, %arg1: i32) -> (i32, i32, i32) {
    %c0_i32 = arith.constant 0 : i32
    %c0_i32_0 = arith.constant 0 : i32
    %c0_i32_1 = arith.constant 0 : i32
    return %arg0, %c0_i32, %c0_i32_0 : i32, i32, i32
  }
}

</mosaic_0001>

<llo_original>
// kernel: tpu_custom_call.1
$region0: #{tpu_custom_call.1}
  #allocation0 [shape = 'u32[]', space=smem, size = 0x4, offset = 0x4, fixed_abs, tag = 'smem constant byte address 0x4 - core index']
  #allocation1 [shape = 'u32[144,128]{1,0:T(1,128)}', space=vmem, size = 0x12000, scoped, tag = 'internal scratch']
  %s0 = inlined_call_operand.hbm [shape: f32[8,32], index: 0, kind: input, shape index: {}]
  %s1 = inlined_call_operand.hbm [shape: f32[8,32], index: 1, kind: input, shape index: {}]
  %s2 = inlined_call_operand.vmem [shape: f32[1,1,8], index: 2, kind: input, shape index: {}]
  %s3 = inlined_call_operand.hbm [shape: f32[1,1,1], index: 3, kind: output, shape index: {}]
  %s4 = sld [smem:[#allocation0]]
  $region42: #{tpu_custom_call.1} parent=0
    _
  %s6 = ssub.s32 1, %s4
  %s7 = scalar_select 0, %s6, %s4
  $region1: #{tpu_custom_call.1} parent=0
    #allocation2 [shape = 'u8[4096]{0}', space=vmem, size = 0x1000, scoped, tag = 'input window, operand 0, single buffered']
    #allocation3 [shape = 's32[1]{0}', space=sflag, size = 0x4, scoped, tag = 'scoped memory for tpu_custom_call.1']
    #allocation4 [shape = 's32[1]{0}', space=sflag, size = 0x4, scoped, tag = 'scoped memory for tpu_custom_call.1']
    #allocation5 [shape = 'u8[4096]{0}', space=vmem, size = 0x1000, scoped, tag = 'input window, operand 1, single buffered']
    #allocation6 [shape = 's32[1]{0}', space=sflag, size = 0x4, scoped, tag = 'scoped memory for tpu_custom_call.1']
    #allocation7 [shape = 'u8[512]{0}', space=vmem, size = 0x400, scoped, tag = 'output window, operand 0, single buffered']
    %8 = vsyncpa [#allocation3], 0
    %9 = vsyncpa [#allocation6], 0
    %10 = vsyncpa [#allocation4], 0
    // Predicated region
    $region2: #{tpu_custom_call.1} parent=1 // pred_check
      _
    $region3: #{tpu_custom_call.1} parent=1 // pred_check_branch
      %12 = sbr.rel (0) target = $region5
    $region4: #{tpu_custom_call.1} parent=1 // pred_region
      %s13 = sadd.s32 0, 0
      %p14 = scmp.lt.s32.totalorder %s13, 0
      %s15 = scalar_select %p14, %s13, 0
      %s17 = ssub.s32 128, 128
      %18 = vsyncadd [#allocation3], %s17
      %s19 = smul.addr %s15, 128
      %s20 = scalar_lea.hbm %s0, %s19
      %s22 = sshll.u32 [#allocation2], 4
      %s23 = int_to_ptr.vmem [resolvable:$true] %s22
      %25 = dma.hbm_to_vmem [thread:$0]  %s20, 128, %s23, [#allocation3]
    $region5: #{tpu_custom_call.1} parent=1 // pred_fallthru
      _
    // Predicated region
    $region6: #{tpu_custom_call.1} parent=1 // pred_check
      _
    $region7: #{tpu_custom_call.1} parent=1 // pred_check_branch
      %27 = sbr.rel (0) target = $region9
    $region8: #{tpu_custom_call.1} parent=1 // pred_region
      %s28 = sadd.s32 0, 0
      %p29 = scmp.lt.s32.totalorder %s28, 0
      %s30 = scalar_select %p29, %s28, 0
      %s32 = ssub.s32 128, 128
      %33 = vsyncadd [#allocation6], %s32
      %s34 = smul.addr %s30, 128
      %s35 = scalar_lea.hbm %s1, %s34
      %s37 = sshll.u32 [#allocation5], 4
      %s38 = int_to_ptr.vmem [resolvable:$true] %s37
      %40 = dma.hbm_to_vmem [thread:$0]  %s35, 128, %s38, [#allocation6]
    $region9: #{tpu_custom_call.1} parent=1 // pred_fallthru
      _
    // Predicated region
    $region10: #{tpu_custom_call.1} parent=1 // pred_check
      _
    $region11: #{tpu_custom_call.1} parent=1 // pred_check_branch
      %42 = sbr.rel (0) target = $region13
    $region12: #{tpu_custom_call.1} parent=1 // pred_region
      %s43 = sadd.s32 0, 0
      %p44 = scmp.lt.s32.totalorder %s43, 0
      %s45 = scalar_select %p44, %s43, 0
      %s46 = scalar_lea.vmem %s2, %s45
      %s47 = sadd.s32 0, 0
    $region13: #{tpu_custom_call.1} parent=1 // pred_fallthru
      _
    // Predicated region
    $region14: #{tpu_custom_call.1} parent=1 // pred_check
      _
    $region15: #{tpu_custom_call.1} parent=1 // pred_check_branch
      %49 = sbr.rel (0) target = $region17
    $region16: #{tpu_custom_call.1} parent=1 // pred_region
      %50 = dma.done [#allocation3], 128
    $region17: #{tpu_custom_call.1} parent=1 // pred_fallthru
      _
    // Predicated region
    $region18: #{tpu_custom_call.1} parent=1 // pred_check
      _
    $region19: #{tpu_custom_call.1} parent=1 // pred_check_branch
      %52 = sbr.rel (0) target = $region21
    $region20: #{tpu_custom_call.1} parent=1 // pred_region
      %53 = dma.done [#allocation6], 128
    $region21: #{tpu_custom_call.1} parent=1 // pred_fallthru
      _
    %s54 = sadd.s32 0, 0
    %p55 = scmp.lt.s32.totalorder %s54, 0
    %s56 = scalar_select %p55, %s54, 0
    %s57 = scalar_lea.vmem %s2, %s56
    %s58 = sadd.s32 0, 0
    %p59 = scmp.lt.s32.totalorder %s58, 0
    %s60 = scalar_select %p59, %s58, 0
    %s61 = sadd.s32 0, 0
    %p62 = scmp.lt.s32.totalorder %s61, 0
    %s63 = scalar_select %p62, %s61, 0
    %s64 = sadd.s32 0, 0
    %p65 = scmp.lt.s32.totalorder %s64, 0
    %s66 = scalar_select %p65, %s64, 0
    %s67 = scalar_lea.vmem %s2, %s66
    %s68 = sadd.s32 0, 0
    %p69 = scmp.eq.s32.totalorder 0, 0
    // Predicated region
    $region22: #{tpu_custom_call.1} parent=1 // pred_check
      %p70 = pneg %p69
    $region23: #{tpu_custom_call.1} parent=1 // pred_check_branch
      %72 = sbr.rel (%p70) target = $region25
    $region24: #{tpu_custom_call.1} parent=1 // pred_region
      %vm73 = vcmask 0
      %74 = vst.msk [vmem:[#allocation7] sm:$0x1] %vm73, 0.0
    $region25: #{tpu_custom_call.1} parent=1 // pred_fallthru
      _
    %v75 = vld [vmem:[#allocation2] sm:$0xff]
    %v76 = vld [vmem:[#allocation5] sm:$0xff]
    %v77 = vsub.f32 %v75, %v76
    %v78 = vadd.f32 %v77, 1e-06
    %v79 = vmul.f32 %v78, %v78
    %vm80 = vcmask 261120
    %v81 = vsel %vm80, %v79, 0.0
    %82 = vadd.xlane.f32.xlu0 %v81
    %v83 = vpop.xlane.xlu0 %82
    %v84 = vrsqrt.pop %v83
    %v85 = vmul.f32 %v83, %v84
    %vm86 = vcmp.eq.f32.partialorder %v83, inf
    %v87 = vsel %vm86, %v83, %v85
    %vm88 = vcmp.eq.f32.partialorder %v83, 0.0
    %v89 = vand.u32 %v83, 2147483648
    %v90 = vsel %vm88, %v89, %v87
    %v91 = vadd.f32 %v90, 1.0
    %v92 = vrcp.pop %v91
    %v93 = vld [vmem:[%s67] sm:$0x1]
    %v94 = vsub.f32 1.0, %v93
    %v96 = vlaneseq
    %v97 = vshrl.u32 %v96, 7
    %v98 = vsub.s32 0, %v97
    %v99 = vrot.slane %v92, %v98
    %v100 = vlaneseq
    %v101 = vshrl.u32 %v100, 7
    %v102 = vsub.s32 1, %v101
    %v103 = vrot.slane %v92, %v102
    %v104 = vlaneseq
    %v105 = vshrl.u32 %v104, 7
    %v106 = vsub.s32 2, %v105
    %v107 = vrot.slane %v92, %v106
    %v108 = vlaneseq
    %v109 = vshrl.u32 %v108, 7
    %v110 = vsub.s32 3, %v109
    %v111 = vrot.slane %v92, %v110
    %v112 = vlaneseq
    %v113 = vshrl.u32 %v112, 7
    %v114 = vsub.s32 4, %v113
    %v115 = vrot.slane %v92, %v114
    %v116 = vlaneseq
    %v117 = vshrl.u32 %v116, 7
    %v118 = vsub.s32 5, %v117
    %v119 = vrot.slane %v92, %v118
    %v120 = vlaneseq
    %v121 = vshrl.u32 %v120, 7
    %v122 = vsub.s32 6, %v121
    %v123 = vrot.slane %v92, %v122
    %v124 = vlaneseq
    %v125 = vshrl.u32 %v124, 7
    %v126 = vsub.s32 7, %v125
    %v127 = vrot.slane %v92, %v126
    %v128 = vcombine.low %v99, %v103
    %v129 = vcombine.low %v107, %v111
    %v130 = vcombine.low %v115, %v119
    %v131 = vcombine.low %v123, %v127
    %v133 = vunpack.c.l.s4 1966171168
    %v134 = vunpack.c.0.s8 %v133
    %v135 = vlaneseq
    %v136 = vshrl.u32 %v135, 7
    %v137 = vsub.s32 %v134, %v136
    %v138 = vrot.slane %v128, %v137
    %v140 = vunpack.c.l.s4 1966171168
    %v141 = vunpack.c.0.s8 %v140
    %v142 = vlaneseq
    %v143 = vshrl.u32 %v142, 7
    %v144 = vsub.s32 %v141, %v143
    %v145 = vrot.slane %v129, %v144
    %v147 = vunpack.c.l.s4 1966171168
    %v148 = vunpack.c.0.s8 %v147
    %v149 = vlaneseq
    %v150 = vshrl.u32 %v149, 7
    %v151 = vsub.s32 %v148, %v150
    %v152 = vrot.slane %v130, %v151
    %v154 = vunpack.c.l.s4 1966171168
    %v155 = vunpack.c.0.s8 %v154
    %v156 = vlaneseq
    %v157 = vshrl.u32 %v156, 7
    %v158 = vsub.s32 %v155, %v157
    %v159 = vrot.slane %v131, %v158
    %v160 = vcombine.low %v138, %v145
    %v161 = vcombine.low %v152, %v159
    %v163 = vunpack.c.l.s4 1966171168
    %v164 = vunpack.c.0.s8 %v163
    %v165 = vlaneseq
    %v166 = vshrl.u32 %v165, 7
    %v167 = vsub.s32 %v164, %v166
    %v168 = vrot.slane %v160, %v167
    %v170 = vunpack.c.l.s4 1966171168
    %v171 = vunpack.c.0.s8 %v170
    %v172 = vlaneseq
    %v173 = vshrl.u32 %v172, 7
    %v174 = vsub.s32 %v171, %v173
    %v175 = vrot.slane %v161, %v174
    %v176 = vcombine.low %v168, %v175
    %177 = vset.pattern.permute.xlu0 0
    %178 = vperm.xlu0 %177, %v176
    %v179 = vpop.permute.xlu0 %178
    %v180 = vlaneseq
    %v181 = vand.u32 %v180, 127
    %v182 = vlaneseq
    %v183 = vshrl.u32 %v182, 7
    %v184 = vsub.s32 %v181, %v183
    %v185 = vrot.slane %v179, %v184
    %v187 = vunpack.c.l.s4 1966171168
    %v188 = vunpack.c.0.s8 %v187
    %v189 = vlaneseq
    %v190 = vshrl.u32 %v189, 7
    %v191 = vsub.s32 %v188, %v190
    %v192 = vrot.slane %v185, %v191
    %v194 = vunpack.c.l.s4 1966171168
    %v195 = vunpack.c.0.s8 %v194
    %v196 = vlaneseq
    %v197 = vshrl.u32 %v196, 7
    %v198 = vsub.s32 %v195, %v197
    %v199 = vrot.slane %v192, %v198
    %v201 = vmul.f32 %v94, %v199
    %v202 = vsub.f32 1.0, %v92
    %v203 = vmax.f32 %v202, 0.0
    %v205 = vlaneseq
    %v206 = vshrl.u32 %v205, 7
    %v207 = vsub.s32 0, %v206
    %v208 = vrot.slane %v203, %v207
    %v209 = vlaneseq
    %v210 = vshrl.u32 %v209, 7
    %v211 = vsub.s32 1, %v210
    %v212 = vrot.slane %v203, %v211
    %v213 = vlaneseq
    %v214 = vshrl.u32 %v213, 7
    %v215 = vsub.s32 2, %v214
    %v216 = vrot.slane %v203, %v215
    %v217 = vlaneseq
    %v218 = vshrl.u32 %v217, 7
    %v219 = vsub.s32 3, %v218
    %v220 = vrot.slane %v203, %v219
    %v221 = vlaneseq
    %v222 = vshrl.u32 %v221, 7
    %v223 = vsub.s32 4, %v222
    %v224 = vrot.slane %v203, %v223
    %v225 = vlaneseq
    %v226 = vshrl.u32 %v225, 7
    %v227 = vsub.s32 5, %v226
    %v228 = vrot.slane %v203, %v227
    %v229 = vlaneseq
    %v230 = vshrl.u32 %v229, 7
    %v231 = vsub.s32 6, %v230
    %v232 = vrot.slane %v203, %v231
    %v233 = vlaneseq
    %v234 = vshrl.u32 %v233, 7
    %v235 = vsub.s32 7, %v234
    %v236 = vrot.slane %v203, %v235
    %v237 = vcombine.low %v208, %v212
    %v238 = vcombine.low %v216, %v220
    %v239 = vcombine.low %v224, %v228
    %v240 = vcombine.low %v232, %v236
    %v242 = vunpack.c.l.s4 1966171168
    %v243 = vunpack.c.0.s8 %v242
    %v244 = vlaneseq
    %v245 = vshrl.u32 %v244, 7
    %v246 = vsub.s32 %v243, %v245
    %v247 = vrot.slane %v237, %v246
    %v249 = vunpack.c.l.s4 1966171168
    %v250 = vunpack.c.0.s8 %v249
    %v251 = vlaneseq
    %v252 = vshrl.u32 %v251, 7
    %v253 = vsub.s32 %v250, %v252
    %v254 = vrot.slane %v238, %v253
    %v256 = vunpack.c.l.s4 1966171168
    %v257 = vunpack.c.0.s8 %v256
    %v258 = vlaneseq
    %v259 = vshrl.u32 %v258, 7
    %v260 = vsub.s32 %v257, %v259
    %v261 = vrot.slane %v239, %v260
    %v263 = vunpack.c.l.s4 1966171168
    %v264 = vunpack.c.0.s8 %v263
    %v265 = vlaneseq
    %v266 = vshrl.u32 %v265, 7
    %v267 = vsub.s32 %v264, %v266
    %v268 = vrot.slane %v240, %v267
    %v269 = vcombine.low %v247, %v254
    %v270 = vcombine.low %v261, %v268
    %v272 = vunpack.c.l.s4 1966171168
    %v273 = vunpack.c.0.s8 %v272
    %v274 = vlaneseq
    %v275 = vshrl.u32 %v274, 7
    %v276 = vsub.s32 %v273, %v275
    %v277 = vrot.slane %v269, %v276
    %v279 = vunpack.c.l.s4 1966171168
    %v280 = vunpack.c.0.s8 %v279
    %v281 = vlaneseq
    %v282 = vshrl.u32 %v281, 7
    %v283 = vsub.s32 %v280, %v282
    %v284 = vrot.slane %v270, %v283
    %v285 = vcombine.low %v277, %v284
    %286 = vset.pattern.permute.xlu0 0
    %287 = vperm.xlu0 %286, %v285
    %v288 = vpop.permute.xlu0 %287
    %v289 = vlaneseq
    %v290 = vshrl.u32 %v289, 7
    %v291 = vsub.s32 %v181, %v290
    %v292 = vrot.slane %v288, %v291
    %v294 = vunpack.c.l.s4 1966171168
    %v295 = vunpack.c.0.s8 %v294
    %v296 = vlaneseq
    %v297 = vshrl.u32 %v296, 7
    %v298 = vsub.s32 %v295, %v297
    %v299 = vrot.slane %v292, %v298
    %v301 = vunpack.c.l.s4 1966171168
    %v302 = vunpack.c.0.s8 %v301
    %v303 = vlaneseq
    %v304 = vshrl.u32 %v303, 7
    %v305 = vsub.s32 %v302, %v304
    %v306 = vrot.slane %v299, %v305
    %v308 = vmul.f32 %v93, %v306
    %v309 = vadd.f32 %v201, %v308
    %s310 = sadd.s32 0, 0
    %s311 = smul.u32 %s310, 8
    %s312 = sadd.s32 %s311, 8
    %p313 = scmp.gt.s32.totalorder %s312, 8
    %p314 = scmp.le.s32.totalorder %s312, 8
    // Predicated region
    $region26: #{tpu_custom_call.1} parent=1 // pred_check
      %p315 = pneg %p314
    $region27: #{tpu_custom_call.1} parent=1 // pred_check_branch
      %317 = sbr.rel (%p315) target = $region29
    $region28: #{tpu_custom_call.1} parent=1 // pred_region
      %v318 = vld [vmem:[#allocation7] sm:$0x1]
      %vm319 = vcmask 57344
      %v320 = vsel %vm319, %v309, 0.0
      %321 = vadd.xlane.f32.xlu0 %v320
      %v322 = vpop.xlane.xlu0 %321
      %v323 = vrot.slane %v322, 4
      %v324 = vadd.f32 %v322, %v323
      %v325 = vrot.slane %v324, 2
      %v326 = vadd.f32 %v324, %v325
      %v327 = vrot.slane %v326, 1
      %v328 = vadd.f32 %v326, %v327
      %s329 = vtos %v328
      %v330 = vstv %s329
      %v331 = vadd.f32 %v318, %v330
      %vm332 = vcmask 0
      %333 = vst.msk [vmem:[#allocation7] sm:$0x1] %vm332, %v331
    $region29: #{tpu_custom_call.1} parent=1 // pred_fallthru
      _
    // Predicated region
    $region30: #{tpu_custom_call.1} parent=1 // pred_check
      %p334 = pneg %p313
    $region31: #{tpu_custom_call.1} parent=1 // pred_check_branch
      %336 = sbr.rel (%p334) target = $region33
    $region32: #{tpu_custom_call.1} parent=1 // pred_region
      %v337 = vlaneseq
      %v338 = vshrl.u32 %v337, 7
      %v339 = vmul.u32 %v338, 8
      %v340 = vadd.s32 %v339, %v181
      %v341 = vstv %s311
      %v342 = vadd.s32 %v341, %v340
      %vm343 = vcmp.lt.s32.totalorder %v342, 8
      %v344 = vsel %vm343, %v309, 0.0
      %v345 = vld [vmem:[#allocation7] sm:$0x1]
      %vm346 = vcmask 57344
      %v347 = vsel %vm346, %v344, 0.0
      %348 = vadd.xlane.f32.xlu0 %v347
      %v349 = vpop.xlane.xlu0 %348
      %v350 = vrot.slane %v349, 4
      %v351 = vadd.f32 %v349, %v350
      %v352 = vrot.slane %v351, 2
      %v353 = vadd.f32 %v351, %v352
      %v354 = vrot.slane %v353, 1
      %v355 = vadd.f32 %v353, %v354
      %s356 = vtos %v355
      %v357 = vstv %s356
      %v358 = vadd.f32 %v345, %v357
      %vm359 = vcmask 0
      %360 = vst.msk [vmem:[#allocation7] sm:$0x1] %vm359, %v358
    $region33: #{tpu_custom_call.1} parent=1 // pred_fallthru
      _
    // Predicated region
    $region34: #{tpu_custom_call.1} parent=1 // pred_check
      _
    $region35: #{tpu_custom_call.1} parent=1 // pred_check_branch
      %362 = sbr.rel (0) target = $region37
    $region36: #{tpu_custom_call.1} parent=1 // pred_region
      %s364 = ssub.s32 16, 16
      %365 = vsyncadd [#allocation4], %s364
      %s367 = sshll.u32 [#allocation7], 4
      %s368 = int_to_ptr.vmem [resolvable:$true] %s367
      %370 = dma.vmem_to_hbm [thread:$0]  %s368, 16, %s3, [#allocation4]
    $region37: #{tpu_custom_call.1} parent=1 // pred_fallthru
      _
    // Predicated region
    $region38: #{tpu_custom_call.1} parent=1 // pred_check
      _
    $region39: #{tpu_custom_call.1} parent=1 // pred_check_branch
      %372 = sbr.rel (0) target = $region41
    $region40: #{tpu_custom_call.1} parent=1 // pred_region
      %373 = dma.done [#allocation4], 16
    $region41: #{tpu_custom_call.1} parent=1 // pred_fallthru
      _
    %374 = vsyncpa [#allocation3], 1
    %375 = vsyncpa [#allocation6], 1
    %376 = vsyncpa [#allocation4], 1

</llo_original>
